<compile_context>
chip_gen: v5e
topology: v5e:2x2
jax: 0.10.0
libtpu: 0.0.40
codegen_flags: <defaults>
</compile_context>

<pallas_src>
import math

import jax
import jax.numpy as jnp
from jax.experimental import pallas as pl
from jax.experimental.pallas import tpu as pltpu

SCALING_ANG = 0.1
SCALING_AZM = math.pi / 6.0
SCALING_ELE = math.pi / 9.0
SCALING_CYC = math.pi / 9.0

N_PAD = 8  # padded output width; columns 0..2 are azm/ele/cyc, rest exactly 0


def _pose_predictor_kernel(feat_ref, w_ref, bs_ref, out_ref):
    # (TILE_B, D) @ (D, N_PAD) -> (TILE_B, N_PAD), f32 accumulation on the MXU.
    logits = jnp.dot(
        feat_ref[...], w_ref[...], preferred_element_type=jnp.float32
    )
    bias = bs_ref[0:1, :]   # (1, N_PAD)
    scale = bs_ref[1:2, :]  # (1, N_PAD): [azm, ele, cyc, 0, ...]
    angles = jnp.tanh((logits + bias) * SCALING_ANG)
    out_ref[...] = (angles * scale).astype(out_ref.dtype)


def _round_up(x: int, m: int) -> int:
    return ((x + m - 1) // m) * m


def _vmem_capacity_bytes() -> int:
    try:
        info = pltpu.get_tpu_info()
        return int(getattr(info, "vmem_capacity_bytes", 64 << 20))
    except Exception:
        return 64 << 20  # conservative: v7x per-TensorCore VMEM


def _choose_tile_b(B: int, D: int, itemsize: int) -> int:
    vmem = _vmem_capacity_bytes()
    # Budget ~3/8 of VMEM for the double-buffered feat tile (48 MiB on the
    # 128 MiB v5e/v6e, 24 MiB on v7x's 64 MiB), leaving room for the output
    # double-buffer, resident weight/bias and compiler temps.
    budget = (vmem * 3) // 8
    t = budget // (2 * D * itemsize)
    t = max(8, (t // 8) * 8)
    # Keep >= 2 grid steps when the batch allows it so (a) BlockSpec
    # double-buffering can actually overlap DMA with compute and (b) the
    # "parallel" batch axis splits across both v7x TensorCores.
    if B > 8:
        t = min(t, _round_up(pl.cdiv(B, 2), 8))
    return min(t, _round_up(B, 8))


def pose_predictor_aec(feat, weight, bias):
    """feat: (B, D) any float dtype; weight: (3, D); bias: (3,) -> (B, 3) f32."""
    B, D = feat.shape
    itemsize = jnp.dtype(feat.dtype).itemsize
    TILE_B = _choose_tile_b(B, D, itemsize)
    n_blocks = pl.cdiv(B, TILE_B)

    # Pre-transposed, lane-padded weight (D, N_PAD) in feat's dtype; padded
    # columns are exactly zero. Bias and scale share one tiny (2, N_PAD) slab.
    w_pad = (
        jnp.zeros((D, N_PAD), jnp.float32)
        .at[:, :3]
        .set(weight.astype(jnp.float32).T)
        .astype(feat.dtype)
    )
    bs = jnp.zeros((2, N_PAD), jnp.float32)
    bs = bs.at[0, :3].set(bias.astype(jnp.float32))
    bs = bs.at[1, :3].set(
        jnp.array([SCALING_AZM, SCALING_ELE, SCALING_CYC], jnp.float32)
    )

    # Explicit VMEM budget: double-buffered feat + out tiles, weight, bias.
    vmem_needed = (
        2 * TILE_B * D * itemsize
        + 2 * TILE_B * N_PAD * 4
        + 2 * D * N_PAD * itemsize
        + 2 * 2 * N_PAD * 4
        + (1 << 20)
    )
    vmem_limit = min(max(vmem_needed, 32 << 20), 100 << 20)

    cost = pl.CostEstimate(
        flops=2 * B * D * N_PAD,
        transcendentals=B * N_PAD,
        bytes_accessed=(
            B * D * itemsize          # feat read
            + D * N_PAD * itemsize    # weight read (resident)
            + 2 * N_PAD * 4           # bias + scale
            + B * N_PAD * 4           # output writeback
        ),
    )

    out_padded = pl.pallas_call(
        _pose_predictor_kernel,
        out_shape=jax.ShapeDtypeStruct((B, N_PAD), jnp.float32),
        grid_spec=pltpu.PrefetchScalarGridSpec(
            num_scalar_prefetch=0,
            grid=(n_blocks,),
            in_specs=[
                # feat: batch-tiled, double-buffered by the pipeline; the
                # ragged last block is padded on read / masked on write.
                pl.BlockSpec((TILE_B, D), lambda i: (i, 0)),
                # weight / bias+scale: constant block index -> VMEM-resident.
                pl.BlockSpec((D, N_PAD), lambda i: (0, 0)),
                pl.BlockSpec((2, N_PAD), lambda i: (0, 0)),
            ],
            out_specs=pl.BlockSpec((TILE_B, N_PAD), lambda i: (i, 0)),
        ),
        compiler_params=pltpu.CompilerParams(
            dimension_semantics=("parallel",),
            vmem_limit_bytes=int(vmem_limit),
        ),
        cost_estimate=cost,
    )(feat, w_pad, bs)

    # Slice the 8-lane slab back to the module's (B, 3) interface.
    return out_padded[:, :3]


if __name__ == "__main__":
    B, D = 2, 32
    key = jax.random.PRNGKey(0)
    k_feat, k_w, k_b = jax.random.split(key, 3)

    feat = jax.random.normal(k_feat, (B, D), dtype=jnp.float32)
    # Mimic torch.nn.Linear default init: U(-1/sqrt(D), 1/sqrt(D))
    bound = 1.0 / math.sqrt(D)
    weight = jax.random.uniform(
        k_w, (3, D), minval=-bound, maxval=bound, dtype=jnp.float32
    )
    bias = jax.random.uniform(
        k_b, (3,), minval=-bound, maxval=bound, dtype=jnp.float32
    )

    out = pose_predictor_aec(feat, weight, bias)
    out = jax.block_until_ready(out)

    # Pure-JAX reference check.
    angles_ref = jnp.tanh((feat @ weight.T + bias) * SCALING_ANG)
    ref = angles_ref * jnp.array(
        [SCALING_AZM, SCALING_ELE, SCALING_CYC], dtype=jnp.float32
    )
    assert out.shape == (B, 3), out.shape
    assert jnp.allclose(out, ref, atol=1e-5), (out, ref)

    print("KERNEL_OK")
</pallas_src>

<mosaic_0001>
module attributes {stable_mosaic.version = 11 : i64} {
  func.func @_pose_predictor_kernel(%arg0: i32, %arg1: memref<8x32xf32, #tpu.memory_space<vmem>>, %arg2: memref<32x8xf32, #tpu.memory_space<vmem>>, %arg3: memref<2x8xf32, #tpu.memory_space<vmem>>, %arg4: memref<8x8xf32, #tpu.memory_space<vmem>>) attributes {dimension_semantics = [#tpu.dimension_semantics<parallel>], iteration_bounds = array<i64: 1>, scalar_prefetch = 0 : i64, scratch_operands = 0 : i64, tpu.core_type = #tpu.core_type<tc>, window_params = [{transform_indices = @transform_0, window_bounds = array<i64: 8, 32>}, {pipeline_mode = #tpu.pipeline_mode<synchronous>, transform_indices = @transform_1, window_bounds = array<i64: 32, 8>}, {pipeline_mode = #tpu.pipeline_mode<synchronous>, transform_indices = @transform_2, window_bounds = array<i64: 2, 8>}, {transform_indices = @transform_3, window_bounds = array<i64: 8, 8>}]} {
    %c0 = arith.constant 0 : index
    %c0_0 = arith.constant 0 : index
    %0 = vector.load %arg1[%c0, %c0_0] : memref<8x32xf32, #tpu.memory_space<vmem>>, vector<8x32xf32>
    %c0_1 = arith.constant 0 : index
    %c0_2 = arith.constant 0 : index
    %1 = vector.load %arg2[%c0_1, %c0_2] : memref<32x8xf32, #tpu.memory_space<vmem>>, vector<32x8xf32>
    %cst = arith.constant dense<0.000000e+00> : vector<8x8xf32>
    %2 = tpu.matmul %0, %1, %cst {dimension_numbers = #tpu.dot_dimension_numbers<[1], [0], [0], [1], [0, 0, 1, 1], [], []>} : vector<8x32xf32>, vector<32x8xf32>, vector<8x8xf32> -> vector<8x8xf32>
    %c0_3 = arith.constant 0 : index
    %c0_4 = arith.constant 0 : index
    %3 = vector.load %arg3[%c0_3, %c0_4] : memref<2x8xf32, #tpu.memory_space<vmem>>, vector<1x8xf32>
    %c1 = arith.constant 1 : index
    %c0_5 = arith.constant 0 : index
    %4 = vector.load %arg3[%c1, %c0_5] : memref<2x8xf32, #tpu.memory_space<vmem>>, vector<1x8xf32>
    %5 = vector.broadcast %3 : vector<1x8xf32> to vector<8x8xf32>
    %6 = arith.addf %2, %5 : vector<8x8xf32>
    %cst_6 = arith.constant 1.000000e-01 : f32
    %7 = vector.broadcast %cst_6 : f32 to vector<8x8xf32>
    %8 = arith.mulf %6, %7 : vector<8x8xf32>
    %9 = math.tanh %8 : vector<8x8xf32>
    %10 = vector.broadcast %4 : vector<1x8xf32> to vector<8x8xf32>
    %11 = arith.mulf %9, %10 : vector<8x8xf32>
    %c0_7 = arith.constant 0 : index
    %c0_8 = arith.constant 0 : index
    %12 = vector.load %arg4[%c0_7, %c0_8] : memref<8x8xf32, #tpu.memory_space<vmem>>, vector<8x8xf32>
    tpu.vector_store %arg4[%c0_7, %c0_8], %11 {strides = array<i32>} : memref<8x8xf32, #tpu.memory_space<vmem>>, vector<8x8xf32>,
    return
  }
  func.func @transform_0(%arg0: i32) -> (i32, i32) {
    %c0_i32 = arith.constant 0 : i32
    %c0_i32_0 = arith.constant 0 : i32
    return %arg0, %c0_i32 : i32, i32
  }
  func.func @transform_1(%arg0: i32) -> (i32, i32) {
    %c0_i32 = arith.constant 0 : i32
    %c0_i32_0 = arith.constant 0 : i32
    %c0_i32_1 = arith.constant 0 : i32
    return %c0_i32, %c0_i32_0 : i32, i32
  }
  func.func @transform_2(%arg0: i32) -> (i32, i32) {
    %c0_i32 = arith.constant 0 : i32
    %c0_i32_0 = arith.constant 0 : i32
    %c0_i32_1 = arith.constant 0 : i32
    return %c0_i32, %c0_i32_0 : i32, i32
  }
  func.func @transform_3(%arg0: i32) -> (i32, i32) {
    %c0_i32 = arith.constant 0 : i32
    %c0_i32_0 = arith.constant 0 : i32
    return %arg0, %c0_i32 : i32, i32
  }
}

</mosaic_0001>

<llo_original>
// kernel: tpu_custom_call.1
$region0: #{tpu_custom_call.1}
  #allocation0 [shape = 'u32[]', space=smem, size = 0x4, offset = 0x4, fixed_abs, tag = 'smem constant byte address 0x4 - core index']
  #allocation1 [shape = 'u32[72,128]{1,0:T(1,128)}', space=vmem, size = 0x9000, scoped, tag = 'internal scratch']
  %s0 = inlined_call_operand.vmem [shape: f32[2,32], index: 0, kind: input, shape index: {}]
  %s1 = inlined_call_operand.vmem [shape: f32[32,8], index: 1, kind: input, shape index: {}]
  %s2 = inlined_call_operand.vmem [shape: f32[2,8], index: 2, kind: input, shape index: {}]
  %s3 = inlined_call_operand.hbm [shape: f32[2,8], index: 3, kind: output, shape index: {}]
  %s4 = sld [smem:[#allocation0]]
  $region22: #{tpu_custom_call.1} parent=0
    _
  %s6 = ssub.s32 1, %s4
  %s7 = scalar_select 0, %s6, %s4
  $region1: #{tpu_custom_call.1} parent=0
    #allocation2 [shape = 'u8[4096]{0}', space=vmem, size = 0x1000, scoped, tag = 'output window, operand 0, single buffered']
    #allocation3 [shape = 's32[1]{0}', space=sflag, size = 0x4, scoped, tag = 'scoped memory for tpu_custom_call.1']
    %8 = vsyncpa [#allocation3], 0
    // Predicated region
    $region2: #{tpu_custom_call.1} parent=1 // pred_check
      _
    $region3: #{tpu_custom_call.1} parent=1 // pred_check_branch
      %10 = sbr.rel (0) target = $region5
    $region4: #{tpu_custom_call.1} parent=1 // pred_region
      _
    $region5: #{tpu_custom_call.1} parent=1 // pred_fallthru
      _
    // Predicated region
    $region6: #{tpu_custom_call.1} parent=1 // pred_check
      _
    $region7: #{tpu_custom_call.1} parent=1 // pred_check_branch
      %12 = sbr.rel (0) target = $region9
    $region8: #{tpu_custom_call.1} parent=1 // pred_region
      _
    $region9: #{tpu_custom_call.1} parent=1 // pred_fallthru
      _
    // Predicated region
    $region10: #{tpu_custom_call.1} parent=1 // pred_check
      _
    $region11: #{tpu_custom_call.1} parent=1 // pred_check_branch
      %14 = sbr.rel (0) target = $region13
    $region12: #{tpu_custom_call.1} parent=1 // pred_region
      _
    $region13: #{tpu_custom_call.1} parent=1 // pred_fallthru
      _
    %v15 = vld [vmem:[%s0] sm:$0xff]
    %v16 = vld [vmem:[%s1] sm:$0xff]
    %v17 = vld [vmem:[%s1 + $0x8] sm:$0xff]
    %v18 = vld [vmem:[%s1 + $0x10] sm:$0xff]
    %v19 = vld [vmem:[%s1 + $0x18] sm:$0xff]
    %v20 = vld [vmem:[%s2] sm:$0x1]
    %v21 = vld [vmem:[%s2 + $0x1] sm:$0x1]
    %v22 = vperm.slane %v20, 0
    %vm23 = vcmask 261120
    %v25 = vsel %vm23, %v15, 0
    %27 = vmatpush.msra.mxu0 0.0
    %28 = vmatpush.msra.mxu0 0.0
    %29 = vmatpush.msra.mxu0 0.0
    %30 = vmatpush.msra.mxu0 0.0
    %31 = vmatpush.msra.mxu0 0.0
    %32 = vmatpush.msra.mxu0 0.0
    %33 = vmatpush.msra.mxu0 0.0
    %34 = vmatpush.msra.mxu0 0.0
    %35 = vmatpush.msra.mxu0 0.0
    %36 = vmatpush.msra.mxu0 0.0
    %37 = vmatpush.msra.mxu0 0.0
    %38 = vmatpush.msra.mxu0 0.0
    %39 = vmatpush.msra.mxu0 %v19
    %40 = vmatpush.msra.mxu0 %v18
    %41 = vmatpush.msra.mxu0 %v17
    %42 = vmatpush.msra.mxu0 %v16
    %43 = vmatmul.f32.gmra.mxu0 %v25
    %v44 = vpop.f32.mrf.mxu0
    %v45 = vadd.f32 %v22, %v44
    %46 = vdwg.mxu0
    %v47 = vmul.f32 %v45, 0.1
    %v48 = vtanh.pop %v47
    %v49 = vperm.slane %v21, 0
    %v50 = vmul.f32 %v48, %v49
    %vm51 = vcmask 64512
    %52 = vst.msk [vmem:[#allocation2] sm:$0xff] %vm51, %v50
    // Predicated region
    $region14: #{tpu_custom_call.1} parent=1 // pred_check
      _
    $region15: #{tpu_custom_call.1} parent=1 // pred_check_branch
      %54 = sbr.rel (0) target = $region17
    $region16: #{tpu_custom_call.1} parent=1 // pred_region
      %56 = vsyncadd [#allocation3], 96
      %s57 = sshll.u32 [#allocation2], 4
      %s58 = int_to_ptr.vmem [resolvable:$true] %s57
      %s59 = sshll.u32 %s3, 4
      %s60 = int_to_ptr.hbm [resolvable:$true] %s59
      %65 = dma.vmem_to_hbm [thread:$0]  %s58, 32, %s60, [#allocation3], 32, 32, 2
    $region17: #{tpu_custom_call.1} parent=1 // pred_fallthru
      _
    // Predicated region
    $region18: #{tpu_custom_call.1} parent=1 // pred_check
      _
    $region19: #{tpu_custom_call.1} parent=1 // pred_check_branch
      %67 = sbr.rel (0) target = $region21
    $region20: #{tpu_custom_call.1} parent=1 // pred_region
      %69 = dma.done [#allocation3], 128
    $region21: #{tpu_custom_call.1} parent=1 // pred_fallthru
      _
    %70 = vsyncpa [#allocation3], 1

</llo_original>
